<compile_context>
chip_gen: v6e
topology: v6e:2x2x1
jax: 0.10.0
libtpu: 0.0.40
codegen_flags: <defaults>
</compile_context>

<pallas_src>
import functools

import jax
import jax.numpy as jnp
import numpy as np
from jax.experimental import pallas as pl
from jax.experimental.pallas import tpu as pltpu


def _round_up(x, m):
    return (x + m - 1) // m * m


# ---------------------------------------------------------------------------
# Kernel: one (tm, tk) x-tile times the (tk, W) fused cos|-sin basis tile.
# ---------------------------------------------------------------------------
def _dft_kernel(x_ref, basis_ref, out_ref, *, tk, sliced_basis):
    k = pl.program_id(1)
    if sliced_basis:
        # Whole basis is resident in VMEM; take the current k-slab of rows.
        start = pl.multiple_of(k * tk, tk)
        basis = basis_ref[pl.ds(start, tk), :]
    else:
        basis = basis_ref[...]
    # In-kernel cast: x streams from HBM in its native dtype; the basis dtype
    # selects the MXU path (f32 multi-pass default, bf16 fast path opt-in).
    x = x_ref[...].astype(basis.dtype)
    partial = jnp.dot(x, basis, preferred_element_type=jnp.float32)

    @pl.when(k == 0)
    def _():
        out_ref[...] = partial

    @pl.when(k > 0)
    def _():
        out_ref[...] += partial


# ---------------------------------------------------------------------------
# Generation-aware VMEM budgeting and tile selection.
# ---------------------------------------------------------------------------
def _vmem_limits():
    vmem = 64 << 20                      # conservative fallback (v7x per-TC VMEM)
    try:
        info = pltpu.get_tpu_info()
        cap = int(getattr(info, "vmem_capacity_bytes", 0))
        if cap > 0:
            vmem = cap
    except Exception:
        pass
    limit = max(int(vmem * 0.75), 32 << 20)   # scoped VMEM limit handed to Mosaic
    budget = int(limit * 0.85)                # what the tiling plan may consume
    return limit, budget


def _select_tiles(m, n, w, x_itemsize, basis_itemsize, budget):
    """Return (tm, tk, basis_resident)."""
    out_itemsize = 4  # f32 output slab

    tm_cands = [c for c in (1024, 512, 256, 128, 64, 32, 16, 8)
                if c <= _round_up(m, 8)]
    if not tm_cands:
        tm_cands = [m]                    # m < 8: full-extent row block
    if m > 8:
        # Keep >= 2 row tiles so the "parallel" axis can be split across the
        # two TensorCores on v7x (harmless ~0.35us extra step elsewhere).
        split_cap = _round_up(-(-m // 2), 8)
        capped = [c for c in tm_cands if c <= split_cap]
        if capped:
            tm_cands = capped

    def fits(tm, tk, basis_rows, basis_bufs):
        return (basis_rows * w * basis_itemsize * basis_bufs
                + 2 * tm * tk * x_itemsize          # double-buffered x tile
                + 2 * tm * w * out_itemsize         # output tile (conservative x2)
                ) <= budget

    # Plan A: single K step, whole basis resident & single-buffered.
    for tm in tm_cands:
        if fits(tm, n, n, 1):
            return tm, n, True

    # K-tile candidates: must divide n; multiples of 256 preferred so the
    # v6e/v7x 256x256 MXU stays fully fed (128 kept only as last-resort divisor).
    tk_cands = [c for c in (4096, 2048, 1024, 512, 256, 128)
                if c < n and n % c == 0]

    # Plan B: k-tiled x, basis still fully resident (sliced in-kernel with pl.ds).
    for tm in tm_cands:
        for tk in tk_cands:
            if fits(tm, tk, n, 1):
                return tm, tk, True

    # Plan C: k-tiled x AND streamed (double-buffered) basis.
    for tm in tm_cands:
        for tk in tk_cands:
            if fits(tm, tk, tk, 2):
                return tm, tk, False

    # Last resort (huge prime-ish n with huge modes).
    # TODO(synk): two-stage Cooley-Tukey factorization to bound basis size.
    tk = tk_cands[-1] if tk_cands else n
    return tm_cands[-1], tk, (tk == n)


# ---------------------------------------------------------------------------
# Public wrapper (matches FFTLayer.forward semantics).
# ---------------------------------------------------------------------------
def fft_layer(x, modes, compute_dtype=jnp.float32):
    """x: (batch, channels, size) real -> (batch, channels, modes) complex64.

    rfft along dim 2, truncated to `modes` or zero-padded up to `modes`.
    compute_dtype=jnp.bfloat16 selects the fast single-pass MXU path (f32
    accumulation kept); the f32 default preserves full rfft accuracy.
    """
    b, c, n = x.shape
    m = b * c
    k_full = n // 2 + 1
    k_keep = min(modes, k_full)

    # Fused lane-dense DFT basis: real cols [0:modes], imag cols [modes:2*modes],
    # zero columns beyond k_keep fold the torch F.pad into the matmul for free.
    w = _round_up(2 * modes, 128)
    nn_ = np.arange(n, dtype=np.float64)[:, None]
    kk_ = np.arange(k_keep, dtype=np.float64)[None, :]
    ang = 2.0 * np.pi * nn_ * kk_ / n
    basis_np = np.zeros((n, w), dtype=np.float32)
    basis_np[:, :k_keep] = np.cos(ang)
    basis_np[:, modes:modes + k_keep] = -np.sin(ang)      # rfft sign convention
    # TODO(synk): for huge n * modes the dense basis constant is O(n*modes);
    # switch to a two-stage Cooley-Tukey factorization in that regime.
    basis = jnp.asarray(basis_np, dtype=compute_dtype)

    # Stream x in its native dtype (no host-side upcast = half the HBM traffic
    # for bf16 callers in the memory-bound small-`modes` regime).
    if not jnp.issubdtype(x.dtype, jnp.floating):
        x = x.astype(jnp.float32)
    x2d = x.reshape(m, n)

    vmem_limit, budget = _vmem_limits()
    x_itemsize = x2d.dtype.itemsize
    basis_itemsize = np.dtype(compute_dtype).itemsize
    tm, tk, basis_resident = _select_tiles(m, n, w, x_itemsize,
                                           basis_itemsize, budget)

    grid = (pl.cdiv(m, tm), pl.cdiv(n, tk))

    if basis_resident:
        # Constant block index -> fetched from HBM exactly once; single buffer
        # halves its VMEM footprint (buys a larger tm).
        basis_spec = pl.BlockSpec((n, w), lambda i, k: (0, 0),
                                  pipeline_mode=pl.Buffered(1))
    else:
        basis_spec = pl.BlockSpec((tk, w), lambda i, k: (k, 0))

    basis_reads = 1 if basis_resident else grid[0]
    cost = pl.CostEstimate(
        flops=2 * m * n * w,
        transcendentals=0,
        bytes_accessed=int(m * n * x_itemsize + m * w * 4
                           + basis_reads * n * w * basis_itemsize),
    )

    kernel = functools.partial(_dft_kernel, tk=tk,
                               sliced_basis=(basis_resident and tk < n))

    out2d = pl.pallas_call(
        kernel,
        out_shape=jax.ShapeDtypeStruct((m, w), jnp.float32),
        grid=grid,
        in_specs=[
            pl.BlockSpec((tm, tk), lambda i, k: (i, k)),       # x: streamed tiles
            basis_spec,
        ],
        out_specs=pl.BlockSpec((tm, w), lambda i, k: (i, 0)),  # resident over k
        compiler_params=pltpu.CompilerParams(
            dimension_semantics=("parallel", "arbitrary"),
            vmem_limit_bytes=int(vmem_limit),
        ),
        cost_estimate=cost,
    )(x2d, basis)

    # Lane-dense slab -> complex64 (truncate/pad already folded into the basis).
    real = out2d[:, :modes].reshape(b, c, modes)
    imag = out2d[:, modes:2 * modes].reshape(b, c, modes)
    # TODO(synk): return (real, imag) planar when the consumer is a spectral
    # conv to save this complex-pack pass in XLA.
    return jax.lax.complex(real, imag)


def _reference(x, modes):
    r = jnp.fft.rfft(x.astype(jnp.float32), axis=2)
    k = r.shape[2]
    if k > modes:
        return r[:, :, :modes]
    if k < modes:
        return jnp.pad(r, ((0, 0), (0, 0), (0, modes - k)))
    return r


if __name__ == "__main__":
    key = jax.random.PRNGKey(0)
    k1, k2 = jax.random.split(key)
    ok = True

    # Case 1: truncation path (size//2+1 = 9 > modes = 8), single row tile.
    x1 = jax.random.normal(k1, (2, 4, 16), dtype=jnp.float32)
    out1 = jax.block_until_ready(fft_layer(x1, 8))
    ref1 = _reference(x1, 8)
    ok &= out1.shape == (2, 4, 8) and bool(
        jnp.allclose(out1, ref1, atol=1e-3, rtol=1e-3))

    # Case 2: zero-pad path (size//2+1 = 65 < modes = 70), multi-tile row grid.
    x2 = jax.random.normal(k2, (8, 256, 128), dtype=jnp.float32)
    out2 = jax.block_until_ready(fft_layer(x2, 70))
    ref2 = _reference(x2, 70)
    ok &= out2.shape == (8, 256, 70) and bool(
        jnp.allclose(out2, ref2, atol=1e-3, rtol=1e-3))

    print("KERNEL_OK" if ok else "KERNEL_MISMATCH")
</pallas_src>

<mosaic_0001>
module attributes {stable_mosaic.version = 11 : i64} {
  func.func @_dft_kernel(%arg0: i32, %arg1: i32, %arg2: memref<8x16xf32, #tpu.memory_space<vmem>>, %arg3: memref<16x128xf32, #tpu.memory_space<vmem>>, %arg4: memref<8x128xf32, #tpu.memory_space<vmem>>) attributes {dimension_semantics = [#tpu.dimension_semantics<parallel>, #tpu.dimension_semantics<arbitrary>], iteration_bounds = array<i64: 1, 1>, scalar_prefetch = 0 : i64, scratch_operands = 0 : i64, tpu.core_type = #tpu.core_type<tc>, window_params = [{transform_indices = @transform_0, window_bounds = array<i64: 8, 16>}, {pipeline_mode = #tpu.pipeline_mode<synchronous>, transform_indices = @transform_1, window_bounds = array<i64: 16, 128>}, {transform_indices = @transform_2, window_bounds = array<i64: 8, 128>}]} {
    %c0 = arith.constant 0 : index
    %c0_0 = arith.constant 0 : index
    %0 = vector.load %arg3[%c0, %c0_0] : memref<16x128xf32, #tpu.memory_space<vmem>>, vector<16x128xf32>
    %c0_1 = arith.constant 0 : index
    %c0_2 = arith.constant 0 : index
    %1 = vector.load %arg2[%c0_1, %c0_2] : memref<8x16xf32, #tpu.memory_space<vmem>>, vector<8x16xf32>
    %cst = arith.constant dense<0.000000e+00> : vector<8x128xf32>
    %2 = tpu.matmul %1, %0, %cst {dimension_numbers = #tpu.dot_dimension_numbers<[1], [0], [0], [1], [0, 0, 1, 1], [], []>} : vector<8x16xf32>, vector<16x128xf32>, vector<8x128xf32> -> vector<8x128xf32>
    %c0_i32 = arith.constant 0 : i32
    %3 = arith.cmpi eq, %arg1, %c0_i32 : i32
    %4 = arith.extui %3 : i1 to i32
    %c0_i32_3 = arith.constant 0 : i32
    %5 = arith.cmpi ne, %4, %c0_i32_3 : i32
    scf.if %5 {
      %c0_6 = arith.constant 0 : index
      %c0_7 = arith.constant 0 : index
      %9 = vector.load %arg4[%c0_6, %c0_7] : memref<8x128xf32, #tpu.memory_space<vmem>>, vector<8x128xf32>
      tpu.vector_store %arg4[%c0_6, %c0_7], %2 {strides = array<i32>} : memref<8x128xf32, #tpu.memory_space<vmem>>, vector<8x128xf32>,
    } else {
    }
    %c0_i32_4 = arith.constant 0 : i32
    %6 = arith.cmpi sgt, %arg1, %c0_i32_4 : i32
    %7 = arith.extui %6 : i1 to i32
    %c0_i32_5 = arith.constant 0 : i32
    %8 = arith.cmpi ne, %7, %c0_i32_5 : i32
    scf.if %8 {
      %c0_6 = arith.constant 0 : index
      %c0_7 = arith.constant 0 : index
      %9 = vector.load %arg4[%c0_6, %c0_7] : memref<8x128xf32, #tpu.memory_space<vmem>>, vector<8x128xf32>
      %10 = arith.addf %9, %2 : vector<8x128xf32>
      %c0_8 = arith.constant 0 : index
      %c0_9 = arith.constant 0 : index
      %11 = vector.load %arg4[%c0_8, %c0_9] : memref<8x128xf32, #tpu.memory_space<vmem>>, vector<8x128xf32>
      tpu.vector_store %arg4[%c0_8, %c0_9], %10 {strides = array<i32>} : memref<8x128xf32, #tpu.memory_space<vmem>>, vector<8x128xf32>,
    } else {
    }
    return
  }
  func.func @transform_0(%arg0: i32, %arg1: i32) -> (i32, i32) {
    %c0_i32 = arith.constant 0 : i32
    return %arg0, %arg1 : i32, i32
  }
  func.func @transform_1(%arg0: i32, %arg1: i32) -> (i32, i32) {
    %c0_i32 = arith.constant 0 : i32
    %c0_i32_0 = arith.constant 0 : i32
    %c0_i32_1 = arith.constant 0 : i32
    return %c0_i32, %c0_i32_0 : i32, i32
  }
  func.func @transform_2(%arg0: i32, %arg1: i32) -> (i32, i32) {
    %c0_i32 = arith.constant 0 : i32
    %c0_i32_0 = arith.constant 0 : i32
    return %arg0, %c0_i32 : i32, i32
  }
}

</mosaic_0001>

<llo_original>
// kernel: tpu_custom_call.1
$region0: #{tpu_custom_call.1}
  #allocation0 [shape = 'u32[]', space=smem, size = 0x4, offset = 0x4, fixed_abs, tag = 'smem constant byte address 0x4 - core index']
  #allocation1 [shape = 'u32[144,128]{1,0:T(1,128)}', space=vmem, size = 0x12000, scoped, tag = 'internal scratch']
  %s0 = inlined_call_operand.hbm [shape: f32[8,16], index: 0, kind: input, shape index: {}]
  %s1 = inlined_call_operand.hbm [shape: f32[16,128], index: 1, kind: input, shape index: {}]
  %s2 = inlined_call_operand.hbm [shape: f32[8,128], index: 2, kind: output, shape index: {}]
  %s3 = sld [smem:[#allocation0]]
  $region34: #{tpu_custom_call.1} parent=0
    _
  %s5 = ssub.s32 1, %s3
  %s6 = scalar_select 0, %s5, %s3
  $region1: #{tpu_custom_call.1} parent=0
    #allocation2 [shape = 'u8[4096]{0}', space=vmem, size = 0x1000, scoped, tag = 'input window, operand 0, single buffered']
    #allocation3 [shape = 's32[1]{0}', space=sflag, size = 0x4, scoped, tag = 'scoped memory for tpu_custom_call.1']
    #allocation4 [shape = 's32[1]{0}', space=sflag, size = 0x4, scoped, tag = 'scoped memory for tpu_custom_call.1']
    #allocation5 [shape = 'u8[8192]{0}', space=vmem, size = 0x2000, scoped, tag = 'input window, operand 1, single buffered']
    #allocation6 [shape = 's32[1]{0}', space=sflag, size = 0x4, scoped, tag = 'scoped memory for tpu_custom_call.1']
    #allocation7 [shape = 'u8[4096]{0}', space=vmem, size = 0x1000, scoped, tag = 'output window, operand 0, single buffered']
    %7 = vsyncpa [#allocation3], 0
    %8 = vsyncpa [#allocation6], 0
    %9 = vsyncpa [#allocation4], 0
    // Predicated region
    $region2: #{tpu_custom_call.1} parent=1 // pred_check
      _
    $region3: #{tpu_custom_call.1} parent=1 // pred_check_branch
      %11 = sbr.rel (0) target = $region5
    $region4: #{tpu_custom_call.1} parent=1 // pred_region
      %s13 = ssub.s32 128, 128
      %14 = vsyncadd [#allocation3], %s13
      %s16 = sshll.u32 [#allocation2], 4
      %s17 = int_to_ptr.vmem [resolvable:$true] %s16
      %19 = dma.hbm_to_vmem [thread:$0]  %s0, 128, %s17, [#allocation3]
    $region5: #{tpu_custom_call.1} parent=1 // pred_fallthru
      _
    // Predicated region
    $region6: #{tpu_custom_call.1} parent=1 // pred_check
      _
    $region7: #{tpu_custom_call.1} parent=1 // pred_check_branch
      %21 = sbr.rel (0) target = $region9
    $region8: #{tpu_custom_call.1} parent=1 // pred_region
      %s23 = ssub.s32 256, 256
      %24 = vsyncadd [#allocation6], %s23
      %s25 = sshll.u32 [#allocation5], 4
      %s26 = int_to_ptr.vmem [resolvable:$true] %s25
      %31 = dma.hbm_to_vmem [thread:$0]  %s1, 256, %s26, [#allocation6], 128, 128, 8
    $region9: #{tpu_custom_call.1} parent=1 // pred_fallthru
      _
    // Predicated region
    $region10: #{tpu_custom_call.1} parent=1 // pred_check
      _
    $region11: #{tpu_custom_call.1} parent=1 // pred_check_branch
      %33 = sbr.rel (0) target = $region13
    $region12: #{tpu_custom_call.1} parent=1 // pred_region
      %34 = dma.done [#allocation3], 128
    $region13: #{tpu_custom_call.1} parent=1 // pred_fallthru
      _
    // Predicated region
    $region14: #{tpu_custom_call.1} parent=1 // pred_check
      _
    $region15: #{tpu_custom_call.1} parent=1 // pred_check_branch
      %36 = sbr.rel (0) target = $region17
    $region16: #{tpu_custom_call.1} parent=1 // pred_region
      %37 = dma.done [#allocation6], 256
    $region17: #{tpu_custom_call.1} parent=1 // pred_fallthru
      _
    %v38 = vld [vmem:[#allocation5] sm:$0xff]
    %v39 = vld [vmem:[#allocation5 + $0x8] sm:$0xff]
    %v40 = vld [vmem:[#allocation2] sm:$0xff]
    %vm41 = vcmask 130048
    %v43 = vsel %vm41, %v40, 0
    %45 = vmatprep.subr.mxu0 0.0
    %46 = vmatpush1.msra.mxu0 0.0
    %47 = vmatprep.subr.mxu0 0.0
    %48 = vmatpush1.msra.mxu0 0.0
    %49 = vmatprep.subr.mxu0 0.0
    %50 = vmatpush1.msra.mxu0 0.0
    %51 = vmatprep.subr.mxu0 0.0
    %52 = vmatpush1.msra.mxu0 0.0
    %53 = vmatprep.subr.mxu0 0.0
    %54 = vmatpush1.msra.mxu0 0.0
    %55 = vmatprep.subr.mxu0 0.0
    %56 = vmatpush1.msra.mxu0 0.0
    %57 = vmatprep.subr.mxu0 0.0
    %58 = vmatpush1.msra.mxu0 0.0
    %59 = vmatprep.subr.mxu0 0.0
    %60 = vmatpush1.msra.mxu0 0.0
    %61 = vmatprep.subr.mxu0 0.0
    %62 = vmatpush1.msra.mxu0 0.0
    %63 = vmatprep.subr.mxu0 0.0
    %64 = vmatpush1.msra.mxu0 0.0
    %65 = vmatprep.subr.mxu0 0.0
    %66 = vmatpush1.msra.mxu0 0.0
    %67 = vmatprep.subr.mxu0 0.0
    %68 = vmatpush1.msra.mxu0 0.0
    %69 = vmatprep.subr.mxu0 0.0
    %70 = vmatpush1.msra.mxu0 0.0
    %71 = vmatprep.subr.mxu0 0.0
    %72 = vmatpush1.msra.mxu0 0.0
    %73 = vmatprep.subr.mxu0 0.0
    %74 = vmatpush1.msra.mxu0 %v39
    %75 = vmatprep.subr.mxu0 0.0
    %76 = vmatpush1.msra.mxu0 %v38
    %77 = vmatprep.subr.mxu0 0.0
    %78 = vmatpush2.msra.mxu0 0.0
    %79 = vmatprep.subr.mxu0 0.0
    %80 = vmatpush2.msra.mxu0 0.0
    %81 = vmatprep.subr.mxu0 0.0
    %82 = vmatpush2.msra.mxu0 0.0
    %83 = vmatprep.subr.mxu0 0.0
    %84 = vmatpush2.msra.mxu0 0.0
    %85 = vmatprep.subr.mxu0 0.0
    %86 = vmatpush2.msra.mxu0 0.0
    %87 = vmatprep.subr.mxu0 0.0
    %88 = vmatpush2.msra.mxu0 0.0
    %89 = vmatprep.subr.mxu0 0.0
    %90 = vmatpush2.msra.mxu0 0.0
    %91 = vmatprep.subr.mxu0 0.0
    %92 = vmatpush2.msra.mxu0 0.0
    %93 = vmatprep.subr.mxu0 0.0
    %94 = vmatpush2.msra.mxu0 0.0
    %95 = vmatprep.subr.mxu0 0.0
    %96 = vmatpush2.msra.mxu0 0.0
    %97 = vmatprep.subr.mxu0 0.0
    %98 = vmatpush2.msra.mxu0 0.0
    %99 = vmatprep.subr.mxu0 0.0
    %100 = vmatpush2.msra.mxu0 0.0
    %101 = vmatprep.subr.mxu0 0.0
    %102 = vmatpush2.msra.mxu0 0.0
    %103 = vmatprep.subr.mxu0 0.0
    %104 = vmatpush2.msra.mxu0 0.0
    %105 = vmatprep.subr.mxu0 0.0
    %106 = vmatpush2.msra.mxu0 0.0
    %107 = vmatprep.subr.mxu0 0.0
    %108 = vmatpush2.msra.mxu0 0.0
    %109 = vmatprep.mubr.f32.mxu0 0.0
    %110 = vmatmul.mubr.f32.gmra.mxu0 %v43
    %v111 = vpop.f32.mrf.mxu0
    %v112 = vadd.f32 0.0, %v111
    %v113 = vpop.f32.mrf.mxu0
    %114 = vdwg.mxu0
    %p115 = scmp.eq.s32.totalorder 0, 0
    // Predicated region
    $region18: #{tpu_custom_call.1} parent=1 // pred_check
      %p116 = pneg %p115
    $region19: #{tpu_custom_call.1} parent=1 // pred_check_branch
      %118 = sbr.rel (%p116) target = $region21
    $region20: #{tpu_custom_call.1} parent=1 // pred_region
      %119 = vst [vmem:[#allocation7] sm:$0xff] %v112
    $region21: #{tpu_custom_call.1} parent=1 // pred_fallthru
      _
    %p120 = scmp.gt.s32.totalorder 0, 0
    // Predicated region
    $region22: #{tpu_custom_call.1} parent=1 // pred_check
      %p121 = pneg %p120
    $region23: #{tpu_custom_call.1} parent=1 // pred_check_branch
      %123 = sbr.rel (%p121) target = $region25
    $region24: #{tpu_custom_call.1} parent=1 // pred_region
      %v124 = vld [vmem:[#allocation7] sm:$0xff]
      %v125 = vadd.f32 %v124, %v112
      %126 = vst [vmem:[#allocation7] sm:$0xff] %v125
    $region25: #{tpu_custom_call.1} parent=1 // pred_fallthru
      _
    // Predicated region
    $region26: #{tpu_custom_call.1} parent=1 // pred_check
      _
    $region27: #{tpu_custom_call.1} parent=1 // pred_check_branch
      %128 = sbr.rel (0) target = $region29
    $region28: #{tpu_custom_call.1} parent=1 // pred_region
      %s130 = ssub.s32 128, 128
      %131 = vsyncadd [#allocation4], %s130
      %s133 = sshll.u32 [#allocation7], 4
      %s134 = int_to_ptr.vmem [resolvable:$true] %s133
      %136 = dma.vmem_to_hbm [thread:$0]  %s134, 128, %s2, [#allocation4]
    $region29: #{tpu_custom_call.1} parent=1 // pred_fallthru
      _
    // Predicated region
    $region30: #{tpu_custom_call.1} parent=1 // pred_check
      _
    $region31: #{tpu_custom_call.1} parent=1 // pred_check_branch
      %138 = sbr.rel (0) target = $region33
    $region32: #{tpu_custom_call.1} parent=1 // pred_region
      %139 = dma.done [#allocation4], 128
    $region33: #{tpu_custom_call.1} parent=1 // pred_fallthru
      _
    %140 = vsyncpa [#allocation3], 1
    %141 = vsyncpa [#allocation6], 1
    %142 = vsyncpa [#allocation4], 1

</llo_original>
